<compile_context>
chip_gen: v5e
topology: v5e:2x2
jax: 0.10.0
libtpu: 0.0.40
codegen_flags: <defaults>
</compile_context>

<pallas_src>
import functools

import jax
import jax.numpy as jnp
from jax.experimental import pallas as pl
from jax.experimental.pallas import tpu as pltpu


# ----------------------------------------------------------------------------
# Fused Pallas kernel: conv (im2col matmul) + ReLU + GAP + SE + heads + entropy
# ----------------------------------------------------------------------------
def basicnet_fused_kernel(patch_ref, wconv_ref, w1_ref, w2_ref, wh_ref,
                          slab_ref, ent_ref, *, hw, out_dim):
    """Whole BasicNet forward for one (small) batch.

    patch_ref: (B*HW, 9*Cin) bf16  im2col patches (batch-major rows)
    wconv_ref: (9*Cin, C)    bf16  conv weights, branches concatenated along Cout
    w1_ref   : (C, C//r)     bf16  SE squeeze weight
    w2_ref   : (C//r, C)     bf16  SE excite weight
    wh_ref   : (C, 128)      bf16  packed [classifier | aux-classifier | 0-pad]
    slab_ref : (B, 2*C+128)  f32   [raw feats | SE feats | logits+div (padded)]
    ent_ref  : (1, 1)        f32   entropy term
    """
    b = patch_ref.shape[0] // hw
    c = wconv_ref.shape[1]

    # --- conv3x3 as im2col matmul (bf16 MXU, f32 accumulate) + ReLU ---------
    conv = jnp.dot(patch_ref[...], wconv_ref[...],
                   preferred_element_type=jnp.float32)        # (B*HW, C)
    conv = jnp.maximum(conv, 0.0)       # remove_last_relu=False -> ReLU

    # --- global average pool over HW: in-kernel sublane reduction -----------
    raw = jnp.mean(jnp.reshape(conv, (b, hw, c)), axis=1)     # (B, C) f32

    # --- SE attention (fc -> relu -> fc -> sigmoid -> scale), no residual ---
    h = jnp.maximum(
        jnp.dot(raw.astype(w1_ref.dtype), w1_ref[...],
                preferred_element_type=jnp.float32), 0.0)
    s = jax.nn.sigmoid(
        jnp.dot(h.astype(w2_ref.dtype), w2_ref[...],
                preferred_element_type=jnp.float32))
    fse = raw * s                                             # (B, C) f32

    # --- classifier + aux classifier in one lane-dense matmul ---------------
    # wh packs fc_w.T over all C rows and aux_w.T only over the last out_dim
    # rows (zeros elsewhere), so head[:, :n_classes] == classifier(fse) and
    # head[:, n_classes:n_classes+n_div] == aux_classifier(fse[:, -out_dim:]).
    head = jnp.dot(fse.astype(wh_ref.dtype), wh_ref[...],
                   preferred_element_type=jnp.float32)        # (B, 128)

    # --- entropy term on post-SE features ------------------------------------
    # torch: (std(0).nan_to_num(0)**2 + eps).log().sum() over last / first
    # feature blocks. Unbiased variance; divisor clamped so B==1 -> var 0.
    eps = 1e-8
    inv_den = 1.0 / float(max(b - 1, 1))
    mean = jnp.mean(fse, axis=0, keepdims=True)
    var = jnp.sum((fse - mean) ** 2, axis=0, keepdims=True) * inv_den  # (1, C)
    logv = jnp.log(var + eps)
    ent_last = jnp.sum(logv[:, c - out_dim:], axis=1, keepdims=True)   # (1, 1)
    if c - out_dim > 0:
        ent_first = jnp.sum(logv[:, :c - out_dim], axis=1, keepdims=True)
        ent_ref[...] = ent_last - ent_first
    else:
        ent_ref[...] = ent_last

    # --- single lane-dense packed output -------------------------------------
    slab_ref[...] = jnp.concatenate([raw, fse, head], axis=1)  # (B, 2*C+128)


# ----------------------------------------------------------------------------
# Glue (plain JAX): im2col, parameter setup, wrapper
# ----------------------------------------------------------------------------
def _im2col_3x3(x_nhwc):
    """3x3, stride 1, pad 1 im2col. Returns (B*H*W, 9*Cin), tap-major columns."""
    b, h, w, cin = x_nhwc.shape
    xp = jnp.pad(x_nhwc, ((0, 0), (1, 1), (1, 1), (0, 0)))
    cols = []
    for dy in range(3):
        for dx in range(3):
            cols.append(xp[:, dy:dy + h, dx:dx + w, :])
    patches = jnp.concatenate(cols, axis=-1)          # (B, H, W, 9*Cin)
    return patches.reshape(b * h * w, 9 * cin)


def basicnet_forward(x_nchw, params):
    """Forward pass of BasicNet (dea branch, ntask>1). x_nchw: (B, Cin, H, W)."""
    out_dim = params["out_dim"]
    n_classes = params["n_classes"]
    n_div = params["n_div"]
    n_branch = params["n_branch"]

    x = jnp.transpose(x_nchw, (0, 2, 3, 1)).astype(jnp.float32)  # NHWC
    b, h, w, cin = x.shape
    hw = h * w

    # TODO(synk): for large images, fuse im2col into the kernel (shifted loads
    # on an NHWC tile) instead of materializing the 9x-expanded patch tensor.
    patches = _im2col_3x3(x).astype(jnp.bfloat16)               # (B*HW, 9*Cin)

    conv_w = params["conv_w"]          # (9*Cin, C) bf16, branches concatenated
    c = conv_w.shape[1]
    head_w = params["head_w"]          # (C, 128) bf16, fc + aux packed
    head_width = head_w.shape[1]
    slab_width = 2 * c + head_width

    vmem = pltpu.MemorySpace.VMEM
    packed, ent = pl.pallas_call(
        functools.partial(basicnet_fused_kernel, hw=hw, out_dim=out_dim),
        out_shape=(
            jax.ShapeDtypeStruct((b, slab_width), jnp.float32),
            jax.ShapeDtypeStruct((1, 1), jnp.float32),
        ),
        in_specs=[pl.BlockSpec(memory_space=vmem)] * 5,
        out_specs=(pl.BlockSpec(memory_space=vmem),
                   pl.BlockSpec(memory_space=vmem)),
    )(patches, conv_w, params["se_w1"], params["se_w2"], head_w)
    # TODO(synk): at realistic B/H/W, add a row-tile grid axis over B*HW with a
    # VMEM accumulator (pl.when init/finalize) and set vmem_limit_bytes; the
    # single full-array block above is sized for these small test shapes.

    raw = packed[:, :c]                                   # pre-SE features
    fse = packed[:, c:2 * c]                              # post-SE features
    logits = packed[:, 2 * c:2 * c + n_classes]
    div_logits = packed[:, 2 * c + n_classes:2 * c + n_classes + n_div]
    feature_list = [raw[:, i * out_dim:(i + 1) * out_dim] for i in range(n_branch)]

    return {
        "feature": fse,
        "logit": logits,
        "div_logit": div_logits,
        "features": feature_list,
        "entropy": ent[0, 0],
    }


def make_params(key, *, cin=3, nf=32, n_branch=2, n_classes=10, n_div=6,
                se_ratio=4):
    """Deterministic synthetic parameters matching BasicNet's structure.

    Conv weights for all branches are concatenated along Cout; classifier and
    aux-classifier weights are transposed and packed into one lane-dense
    (C, 128) matrix once, at creation time.
    """
    c = nf * n_branch
    ks = jax.random.split(key, 5)

    conv_w_b = (jax.random.normal(ks[0], (n_branch, 9 * cin, nf), jnp.float32)
                * (1.0 / jnp.sqrt(9.0 * cin)))
    conv_w = jnp.concatenate([conv_w_b[i] for i in range(n_branch)], axis=1)

    se_w1 = (jax.random.normal(ks[1], (c, c // se_ratio), jnp.float32)
             / jnp.sqrt(float(c)))
    se_w2 = (jax.random.normal(ks[2], (c // se_ratio, c), jnp.float32)
             / jnp.sqrt(float(c // se_ratio)))

    # classifier: kaiming_normal_(nonlinearity='linear') -> std = 1/sqrt(fan_in)
    fc_w = (jax.random.normal(ks[3], (n_classes, c), jnp.float32)
            / jnp.sqrt(float(c)))
    aux_w = (jax.random.normal(ks[4], (n_div, nf), jnp.float32)
             / jnp.sqrt(float(nf)))

    head_width = max(128, -(-(n_classes + n_div) // 128) * 128)
    head_w = jnp.zeros((c, head_width), jnp.float32)
    head_w = head_w.at[:, :n_classes].set(fc_w.T)                       # logits
    head_w = head_w.at[c - nf:, n_classes:n_classes + n_div].set(aux_w.T)  # div

    return {
        "conv_w": conv_w.astype(jnp.bfloat16),
        "se_w1": se_w1.astype(jnp.bfloat16),
        "se_w2": se_w2.astype(jnp.bfloat16),
        "head_w": head_w.astype(jnp.bfloat16),
        "out_dim": nf,
        "n_classes": n_classes,
        "n_div": n_div,
        "n_branch": n_branch,
    }


if __name__ == "__main__":
    key = jax.random.PRNGKey(0)
    kx, kp = jax.random.split(key)

    # Small, module-consistent shapes: batch=2, channels=3 (image), 16x16
    # spatial, nf=32 features per branch, 2 branches (ntask=2), 10 classes,
    # 'n+1'=6 divergence classes.
    x = jax.random.normal(kx, (2, 3, 16, 16), jnp.float32)   # NCHW, like PyTorch
    params = make_params(kp, cin=3, nf=32, n_branch=2, n_classes=10, n_div=6)

    out = basicnet_forward(x, params)
    out = jax.block_until_ready(out)

    assert out["feature"].shape == (2, 64)
    assert out["logit"].shape == (2, 10)
    assert out["div_logit"].shape == (2, 6)
    assert len(out["features"]) == 2 and out["features"][0].shape == (2, 32)
    assert out["entropy"].shape == ()
    assert bool(jnp.isfinite(out["entropy"]))

    print("KERNEL_OK")
</pallas_src>

<mosaic_0001>
module attributes {stable_mosaic.version = 11 : i64} {
  func.func @basicnet_fused_kernel(%arg0: memref<512x27xbf16, #tpu.memory_space<vmem>>, %arg1: memref<27x64xbf16, #tpu.memory_space<vmem>>, %arg2: memref<64x16xbf16, #tpu.memory_space<vmem>>, %arg3: memref<16x64xbf16, #tpu.memory_space<vmem>>, %arg4: memref<64x128xbf16, #tpu.memory_space<vmem>>, %arg5: memref<2x256xf32, #tpu.memory_space<vmem>>, %arg6: memref<1x1xf32, #tpu.memory_space<vmem>>) attributes {dimension_semantics = [], scalar_prefetch = 0 : i64, scratch_operands = 0 : i64, tpu.core_type = #tpu.core_type<tc>} {
    %c0 = arith.constant 0 : index
    %c0_0 = arith.constant 0 : index
    %0 = vector.load %arg0[%c0, %c0_0] : memref<512x27xbf16, #tpu.memory_space<vmem>>, vector<512x27xbf16>
    %c0_1 = arith.constant 0 : index
    %c0_2 = arith.constant 0 : index
    %1 = vector.load %arg1[%c0_1, %c0_2] : memref<27x64xbf16, #tpu.memory_space<vmem>>, vector<27x64xbf16>
    %cst = arith.constant dense<0.000000e+00> : vector<512x64xf32>
    %2 = tpu.matmul %0, %1, %cst {dimension_numbers = #tpu.dot_dimension_numbers<[1], [0], [0], [1], [0, 0, 1, 1], [], []>} : vector<512x27xbf16>, vector<27x64xbf16>, vector<512x64xf32> -> vector<512x64xf32>
    %cst_3 = arith.constant 0.000000e+00 : f32
    %3 = vector.broadcast %cst_3 : f32 to vector<512x64xf32>
    %4 = arith.maximumf %2, %3 : vector<512x64xf32>
    %5 = vector.shape_cast %4 : vector<512x64xf32> to vector<2x256x64xf32>
    %cst_4 = arith.constant dense<0.000000e+00> : vector<2x64xf32>
    %6 = vector.multi_reduction <add>, %5, %cst_4 [1] : vector<2x256x64xf32> to vector<2x64xf32>
    %cst_5 = arith.constant 2.560000e+02 : f32
    %7 = vector.broadcast %cst_5 : f32 to vector<2x64xf32>
    %8 = arith.divf %6, %7 : vector<2x64xf32>
    %9 = arith.truncf %8 : vector<2x64xf32> to vector<2x64xbf16>
    %c0_6 = arith.constant 0 : index
    %c0_7 = arith.constant 0 : index
    %10 = vector.load %arg2[%c0_6, %c0_7] : memref<64x16xbf16, #tpu.memory_space<vmem>>, vector<64x16xbf16>
    %cst_8 = arith.constant dense<0.000000e+00> : vector<2x16xf32>
    %11 = tpu.matmul %9, %10, %cst_8 {dimension_numbers = #tpu.dot_dimension_numbers<[1], [0], [0], [1], [0, 0, 1, 1], [], []>} : vector<2x64xbf16>, vector<64x16xbf16>, vector<2x16xf32> -> vector<2x16xf32>
    %cst_9 = arith.constant 0.000000e+00 : f32
    %12 = vector.broadcast %cst_9 : f32 to vector<2x16xf32>
    %13 = arith.maximumf %11, %12 : vector<2x16xf32>
    %14 = arith.truncf %13 : vector<2x16xf32> to vector<2x16xbf16>
    %c0_10 = arith.constant 0 : index
    %c0_11 = arith.constant 0 : index
    %15 = vector.load %arg3[%c0_10, %c0_11] : memref<16x64xbf16, #tpu.memory_space<vmem>>, vector<16x64xbf16>
    %cst_12 = arith.constant dense<0.000000e+00> : vector<2x64xf32>
    %16 = tpu.matmul %14, %15, %cst_12 {dimension_numbers = #tpu.dot_dimension_numbers<[1], [0], [0], [1], [0, 0, 1, 1], [], []>} : vector<2x16xbf16>, vector<16x64xbf16>, vector<2x64xf32> -> vector<2x64xf32>
    %17 = arith.negf %16 : vector<2x64xf32>
    %18 = math.exp %17 : vector<2x64xf32>
    %cst_13 = arith.constant 1.000000e+00 : f32
    %19 = vector.broadcast %cst_13 : f32 to vector<2x64xf32>
    %20 = arith.addf %19, %18 : vector<2x64xf32>
    %21 = arith.divf %19, %20 : vector<2x64xf32>
    %22 = arith.mulf %8, %21 : vector<2x64xf32>
    %23 = arith.truncf %22 : vector<2x64xf32> to vector<2x64xbf16>
    %c0_14 = arith.constant 0 : index
    %c0_15 = arith.constant 0 : index
    %24 = vector.load %arg4[%c0_14, %c0_15] : memref<64x128xbf16, #tpu.memory_space<vmem>>, vector<64x128xbf16>
    %cst_16 = arith.constant dense<0.000000e+00> : vector<2x128xf32>
    %25 = tpu.matmul %23, %24, %cst_16 {dimension_numbers = #tpu.dot_dimension_numbers<[1], [0], [0], [1], [0, 0, 1, 1], [], []>} : vector<2x64xbf16>, vector<64x128xbf16>, vector<2x128xf32> -> vector<2x128xf32>
    %cst_17 = arith.constant dense<0.000000e+00> : vector<64xf32>
    %26 = vector.multi_reduction <add>, %22, %cst_17 [0] : vector<2x64xf32> to vector<64xf32>
    %27 = vector.shape_cast %26 : vector<64xf32> to vector<1x64xf32>
    %cst_18 = arith.constant 2.000000e+00 : f32
    %28 = vector.broadcast %cst_18 : f32 to vector<1x64xf32>
    %29 = arith.divf %27, %28 : vector<1x64xf32>
    %30 = vector.broadcast %29 : vector<1x64xf32> to vector<2x64xf32>
    %31 = arith.subf %22, %30 : vector<2x64xf32>
    %32 = arith.mulf %31, %31 : vector<2x64xf32>
    %cst_19 = arith.constant dense<0.000000e+00> : vector<64xf32>
    %33 = vector.multi_reduction <add>, %32, %cst_19 [0] : vector<2x64xf32> to vector<64xf32>
    %34 = vector.shape_cast %33 : vector<64xf32> to vector<1x64xf32>
    %cst_20 = arith.constant 1.000000e+00 : f32
    %35 = vector.broadcast %cst_20 : f32 to vector<1x64xf32>
    %36 = arith.mulf %34, %35 : vector<1x64xf32>
    %cst_21 = arith.constant 9.99999993E-9 : f32
    %37 = vector.broadcast %cst_21 : f32 to vector<1x64xf32>
    %38 = arith.addf %36, %37 : vector<1x64xf32>
    %39 = math.log %38 : vector<1x64xf32>
    %40 = vector.extract_strided_slice %39 {offsets = [0, 32], sizes = [1, 32], strides = [1, 1]} : vector<1x64xf32> to vector<1x32xf32>
    %cst_22 = arith.constant dense<0.000000e+00> : vector<1xf32>
    %41 = vector.multi_reduction <add>, %40, %cst_22 [1] : vector<1x32xf32> to vector<1xf32>
    %42 = vector.shape_cast %41 : vector<1xf32> to vector<1x1xf32>
    %43 = vector.extract_strided_slice %39 {offsets = [0, 0], sizes = [1, 32], strides = [1, 1]} : vector<1x64xf32> to vector<1x32xf32>
    %cst_23 = arith.constant dense<0.000000e+00> : vector<1xf32>
    %44 = vector.multi_reduction <add>, %43, %cst_23 [1] : vector<1x32xf32> to vector<1xf32>
    %45 = vector.shape_cast %44 : vector<1xf32> to vector<1x1xf32>
    %46 = arith.subf %42, %45 : vector<1x1xf32>
    %c0_24 = arith.constant 0 : index
    %c0_25 = arith.constant 0 : index
    %47 = vector.load %arg6[%c0_24, %c0_25] : memref<1x1xf32, #tpu.memory_space<vmem>>, vector<1x1xf32>
    tpu.vector_store %arg6[%c0_24, %c0_25], %46 {strides = array<i32>} : memref<1x1xf32, #tpu.memory_space<vmem>>, vector<1x1xf32>,
    %48 = tpu.concatenate %8, %22, %25 in 1 : vector<2x64xf32>, vector<2x64xf32>, vector<2x128xf32> -> vector<2x256xf32>
    %c0_26 = arith.constant 0 : index
    %c0_27 = arith.constant 0 : index
    %49 = vector.load %arg5[%c0_26, %c0_27] : memref<2x256xf32, #tpu.memory_space<vmem>>, vector<2x256xf32>
    tpu.vector_store %arg5[%c0_26, %c0_27], %48 {strides = array<i32>} : memref<2x256xf32, #tpu.memory_space<vmem>>, vector<2x256xf32>,
    return
  }
}

</mosaic_0001>

<llo_original>
// kernel: tpu_custom_call.1
$region0: #{tpu_custom_call.1}
  #allocation0 [shape = 'u32[]', space=smem, size = 0x4, offset = 0x4, fixed_abs, tag = 'smem constant byte address 0x4 - core index']
  #allocation1 [shape = 'u32[72,128]{1,0:T(1,128)}', space=vmem, size = 0x9000, scoped, tag = 'internal scratch']
  %s0 = inlined_call_operand.vmem [shape: bf16[512,27], index: 0, kind: input, shape index: {}]
  %s1 = inlined_call_operand.vmem [shape: bf16[27,64], index: 1, kind: input, shape index: {}]
  %s2 = inlined_call_operand.vmem [shape: bf16[64,16], index: 2, kind: input, shape index: {}]
  %s3 = inlined_call_operand.vmem [shape: bf16[16,64], index: 3, kind: input, shape index: {}]
  %s4 = inlined_call_operand.vmem [shape: bf16[64,128], index: 4, kind: input, shape index: {}]
  %s5 = inlined_call_operand.hbm [shape: f32[2,256], index: 5, kind: output, shape index: {0}]
  %s6 = inlined_call_operand.hbm [shape: f32[1,1], index: 6, kind: output, shape index: {1}]
  %7 = xla_tuple %s5, %s6
  %s8 = sld [smem:[#allocation0]]
  $region38: #{tpu_custom_call.1} parent=0
    _
  %s10 = ssub.s32 1, %s8
  %s11 = scalar_select 0, %s10, %s8
  $region1: #{tpu_custom_call.1} parent=0
    #allocation2 [shape = 'u8[2048]{0}', space=vmem, size = 0x800, scoped, tag = 'output window, operand 0, single buffered']
    #allocation3 [shape = 's32[1]{0}', space=sflag, size = 0x4, scoped, tag = 'scoped memory for tpu_custom_call.1']
    #allocation4 [shape = 'u8[512]{0}', space=vmem, size = 0x400, scoped, tag = 'output window, operand 1, single buffered']
    #allocation5 [shape = 's32[1]{0}', space=sflag, size = 0x4, scoped, tag = 'scoped memory for tpu_custom_call.1']
    %12 = vsyncpa [#allocation3], 0
    %13 = vsyncpa [#allocation5], 0
    // Predicated region
    $region2: #{tpu_custom_call.1} parent=1 // pred_check
      _
    $region3: #{tpu_custom_call.1} parent=1 // pred_check_branch
      %15 = sbr.rel (0) target = $region5
    $region4: #{tpu_custom_call.1} parent=1 // pred_region
      _
    $region5: #{tpu_custom_call.1} parent=1 // pred_fallthru
      _
    // Predicated region
    $region6: #{tpu_custom_call.1} parent=1 // pred_check
      _
    $region7: #{tpu_custom_call.1} parent=1 // pred_check_branch
      %17 = sbr.rel (0) target = $region9
    $region8: #{tpu_custom_call.1} parent=1 // pred_region
      _
    $region9: #{tpu_custom_call.1} parent=1 // pred_fallthru
      _
    // Predicated region
    $region10: #{tpu_custom_call.1} parent=1 // pred_check
      _
    $region11: #{tpu_custom_call.1} parent=1 // pred_check_branch
      %19 = sbr.rel (0) target = $region13
    $region12: #{tpu_custom_call.1} parent=1 // pred_region
      _
    $region13: #{tpu_custom_call.1} parent=1 // pred_fallthru
      _
    // Predicated region
    $region14: #{tpu_custom_call.1} parent=1 // pred_check
      _
    $region15: #{tpu_custom_call.1} parent=1 // pred_check_branch
      %21 = sbr.rel (0) target = $region17
    $region16: #{tpu_custom_call.1} parent=1 // pred_region
      _
    $region17: #{tpu_custom_call.1} parent=1 // pred_fallthru
      _
    // Predicated region
    $region18: #{tpu_custom_call.1} parent=1 // pred_check
      _
    $region19: #{tpu_custom_call.1} parent=1 // pred_check_branch
      %23 = sbr.rel (0) target = $region21
    $region20: #{tpu_custom_call.1} parent=1 // pred_region
      _
    $region21: #{tpu_custom_call.1} parent=1 // pred_fallthru
      _
    %v25 = vld [vmem:[%s0] sm:$0xf]
    %v26 = vld [vmem:[%s0 + $0x4] sm:$0xf]
    %v27 = vld [vmem:[%s0 + $0x8] sm:$0xf]
    %v28 = vld [vmem:[%s0 + $0xc] sm:$0xf]
    %v29 = vld [vmem:[%s0 + $0x10] sm:$0xf]
    %v30 = vld [vmem:[%s0 + $0x14] sm:$0xf]
    %v31 = vld [vmem:[%s0 + $0x18] sm:$0xf]
    %v32 = vld [vmem:[%s0 + $0x1c] sm:$0xf]
    %v33 = vld [vmem:[%s0 + $0x20] sm:$0xf]
    %v34 = vld [vmem:[%s0 + $0x24] sm:$0xf]
    %v35 = vld [vmem:[%s0 + $0x28] sm:$0xf]
    %v36 = vld [vmem:[%s0 + $0x2c] sm:$0xf]
    %v37 = vld [vmem:[%s0 + $0x30] sm:$0xf]
    %v38 = vld [vmem:[%s0 + $0x34] sm:$0xf]
    %v39 = vld [vmem:[%s0 + $0x38] sm:$0xf]
    %v40 = vld [vmem:[%s0 + $0x3c] sm:$0xf]
    %v41 = vld [vmem:[%s0 + $0x40] sm:$0xf]
    %v42 = vld [vmem:[%s0 + $0x44] sm:$0xf]
    %v43 = vld [vmem:[%s0 + $0x48] sm:$0xf]
    %v44 = vld [vmem:[%s0 + $0x4c] sm:$0xf]
    %v45 = vld [vmem:[%s0 + $0x50] sm:$0xf]
    %v46 = vld [vmem:[%s0 + $0x54] sm:$0xf]
    %v47 = vld [vmem:[%s0 + $0x58] sm:$0xf]
    %v48 = vld [vmem:[%s0 + $0x5c] sm:$0xf]
    %v49 = vld [vmem:[%s0 + $0x60] sm:$0xf]
    %v50 = vld [vmem:[%s0 + $0x64] sm:$0xf]
    %v51 = vld [vmem:[%s0 + $0x68] sm:$0xf]
    %v52 = vld [vmem:[%s0 + $0x6c] sm:$0xf]
    %v53 = vld [vmem:[%s0 + $0x70] sm:$0xf]
    %v54 = vld [vmem:[%s0 + $0x74] sm:$0xf]
    %v55 = vld [vmem:[%s0 + $0x78] sm:$0xf]
    %v56 = vld [vmem:[%s0 + $0x7c] sm:$0xf]
    %v57 = vld [vmem:[%s0 + $0x80] sm:$0xf]
    %v58 = vld [vmem:[%s0 + $0x84] sm:$0xf]
    %v59 = vld [vmem:[%s0 + $0x88] sm:$0xf]
    %v60 = vld [vmem:[%s0 + $0x8c] sm:$0xf]
    %v61 = vld [vmem:[%s0 + $0x90] sm:$0xf]
    %v62 = vld [vmem:[%s0 + $0x94] sm:$0xf]
    %v63 = vld [vmem:[%s0 + $0x98] sm:$0xf]
    %v64 = vld [vmem:[%s0 + $0x9c] sm:$0xf]
    %v65 = vld [vmem:[%s0 + $0xa0] sm:$0xf]
    %v66 = vld [vmem:[%s0 + $0xa4] sm:$0xf]
    %v67 = vld [vmem:[%s0 + $0xa8] sm:$0xf]
    %v68 = vld [vmem:[%s0 + $0xac] sm:$0xf]
    %v69 = vld [vmem:[%s0 + $0xb0] sm:$0xf]
    %v70 = vld [vmem:[%s0 + $0xb4] sm:$0xf]
    %v71 = vld [vmem:[%s0 + $0xb8] sm:$0xf]
    %v72 = vld [vmem:[%s0 + $0xbc] sm:$0xf]
    %v73 = vld [vmem:[%s0 + $0xc0] sm:$0xf]
    %v74 = vld [vmem:[%s0 + $0xc4] sm:$0xf]
    %v75 = vld [vmem:[%s0 + $0xc8] sm:$0xf]
    %v76 = vld [vmem:[%s0 + $0xcc] sm:$0xf]
    %v77 = vld [vmem:[%s0 + $0xd0] sm:$0xf]
    %v78 = vld [vmem:[%s0 + $0xd4] sm:$0xf]
    %v79 = vld [vmem:[%s0 + $0xd8] sm:$0xf]
    %v80 = vld [vmem:[%s0 + $0xdc] sm:$0xf]
    %v81 = vld [vmem:[%s0 + $0xe0] sm:$0xf]
    %v82 = vld [vmem:[%s0 + $0xe4] sm:$0xf]
    %v83 = vld [vmem:[%s0 + $0xe8] sm:$0xf]
    %v84 = vld [vmem:[%s0 + $0xec] sm:$0xf]
    %v85 = vld [vmem:[%s0 + $0xf0] sm:$0xf]
    %v86 = vld [vmem:[%s0 + $0xf4] sm:$0xf]
    %v87 = vld [vmem:[%s0 + $0xf8] sm:$0xf]
    %v88 = vld [vmem:[%s0 + $0xfc] sm:$0xf]
    %v89 = vld [vmem:[%s1] sm:$0xf]
    %v90 = vld [vmem:[%s1 + $0x4] sm:$0xf]
    %v91 = vld [vmem:[%s1 + $0x8] sm:$0xf]
    %v92 = vld [vmem:[%s1 + $0xc] sm:$0x3]
    %v157 = vunpack.c.l.b16 %v25
    %v158 = vunpack.c.l.b16 %v26
    %v159 = vunpack.c.l.b16 %v27
    %v160 = vunpack.c.l.b16 %v28
    %v161 = vunpack.c.l.b16 %v29
    %v162 = vunpack.c.l.b16 %v30
    %v163 = vunpack.c.l.b16 %v31
    %v164 = vunpack.c.l.b16 %v32
    %v165 = vunpack.c.l.b16 %v33
    %v166 = vunpack.c.l.b16 %v34
    %v167 = vunpack.c.l.b16 %v35
    %v168 = vunpack.c.l.b16 %v36
    %v169 = vunpack.c.l.b16 %v37
    %v170 = vunpack.c.l.b16 %v38
    %v171 = vunpack.c.l.b16 %v39
    %v172 = vunpack.c.l.b16 %v40
    %v173 = vunpack.c.l.b16 %v41
    %v174 = vunpack.c.l.b16 %v42
    %v175 = vunpack.c.l.b16 %v43
    %v176 = vunpack.c.l.b16 %v44
    %v177 = vunpack.c.l.b16 %v45
    %v178 = vunpack.c.l.b16 %v46
    %v179 = vunpack.c.l.b16 %v47
    %v180 = vunpack.c.l.b16 %v48
    %v181 = vunpack.c.l.b16 %v49
    %v182 = vunpack.c.l.b16 %v50
    %v183 = vunpack.c.l.b16 %v51
    %v184 = vunpack.c.l.b16 %v52
    %v185 = vunpack.c.l.b16 %v53
    %v186 = vunpack.c.l.b16 %v54
    %v187 = vunpack.c.l.b16 %v55
    %v188 = vunpack.c.l.b16 %v56
    %v189 = vunpack.c.l.b16 %v57
    %v190 = vunpack.c.l.b16 %v58
    %v191 = vunpack.c.l.b16 %v59
    %v192 = vunpack.c.l.b16 %v60
    %v193 = vunpack.c.l.b16 %v61
    %v194 = vunpack.c.l.b16 %v62
    %v195 = vunpack.c.l.b16 %v63
    %v196 = vunpack.c.l.b16 %v64
    %v197 = vunpack.c.l.b16 %v65
    %v198 = vunpack.c.l.b16 %v66
    %v199 = vunpack.c.l.b16 %v67
    %v200 = vunpack.c.l.b16 %v68
    %v201 = vunpack.c.l.b16 %v69
    %v202 = vunpack.c.l.b16 %v70
    %v203 = vunpack.c.l.b16 %v71
    %v204 = vunpack.c.l.b16 %v72
    %v205 = vunpack.c.l.b16 %v73
    %v206 = vunpack.c.l.b16 %v74
    %v207 = vunpack.c.l.b16 %v75
    %v208 = vunpack.c.l.b16 %v76
    %v209 = vunpack.c.l.b16 %v77
    %v210 = vunpack.c.l.b16 %v78
    %v211 = vunpack.c.l.b16 %v79
    %v212 = vunpack.c.l.b16 %v80
    %v213 = vunpack.c.l.b16 %v81
    %v214 = vunpack.c.l.b16 %v82
    %v215 = vunpack.c.l.b16 %v83
    %v216 = vunpack.c.l.b16 %v84
    %v217 = vunpack.c.l.b16 %v85
    %v218 = vunpack.c.l.b16 %v86
    %v219 = vunpack.c.l.b16 %v87
    %v220 = vunpack.c.l.b16 %v88
    %v221 = vpack.c.b16 %v158, %v157
    %v222 = vpack.c.b16 %v160, %v159
    %v223 = vpack.c.b16 %v162, %v161
    %v224 = vpack.c.b16 %v164, %v163
    %v225 = vpack.c.b16 %v166, %v165
    %v226 = vpack.c.b16 %v168, %v167
    %v227 = vpack.c.b16 %v170, %v169
    %v228 = vpack.c.b16 %v172, %v171
    %v229 = vpack.c.b16 %v174, %v173
    %v230 = vpack.c.b16 %v176, %v175
    %v231 = vpack.c.b16 %v178, %v177
    %v232 = vpack.c.b16 %v180, %v179
    %v233 = vpack.c.b16 %v182, %v181
    %v234 = vpack.c.b16 %v184, %v183
    %v235 = vpack.c.b16 %v186, %v185
    %v236 = vpack.c.b16 %v188, %v187
    %v237 = vpack.c.b16 %v190, %v189
    %v238 = vpack.c.b16 %v192, %v191
    %v239 = vpack.c.b16 %v194, %v193
    %v240 = vpack.c.b16 %v196, %v195
    %v241 = vpack.c.b16 %v198, %v197
    %v242 = vpack.c.b16 %v200, %v199
    %v243 = vpack.c.b16 %v202, %v201
    %v244 = vpack.c.b16 %v204, %v203
    %v245 = vpack.c.b16 %v206, %v205
    %v246 = vpack.c.b16 %v208, %v207
    %v247 = vpack.c.b16 %v210, %v209
    %v248 = vpack.c.b16 %v212, %v211
    %v249 = vpack.c.b16 %v214, %v213
    %v250 = vpack.c.b16 %v216, %v215
    %v251 = vpack.c.b16 %v218, %v217
    %v252 = vpack.c.b16 %v220, %v219
    %v257 = vunpack.c.l.b16 %v89
    %v258 = vunpack.c.l.b16 %v90
    %v259 = vunpack.c.l.b16 %v91
    %v260 = vunpack.c.l.b16 %v92
    %v261 = vpack.c.b16 %v258, %v257
    %v262 = vpack.c.b16 %v260, %v259
    %vm264 = vcmask 220160
    %v266 = vsel %vm264, %v221, 0
    %v269 = vsel %vm264, %v222, 0
    %v272 = vsel %vm264, %v223, 0
    %v275 = vsel %vm264, %v224, 0
    %v278 = vsel %vm264, %v225, 0
    %v281 = vsel %vm264, %v226, 0
    %v284 = vsel %vm264, %v227, 0
    %v287 = vsel %vm264, %v228, 0
    %v290 = vsel %vm264, %v229, 0
    %v293 = vsel %vm264, %v230, 0
    %v296 = vsel %vm264, %v231, 0
    %v299 = vsel %vm264, %v232, 0
    %v302 = vsel %vm264, %v233, 0
    %v305 = vsel %vm264, %v234, 0
    %v308 = vsel %vm264, %v235, 0
    %v311 = vsel %vm264, %v236, 0
    %v314 = vsel %vm264, %v237, 0
    %v317 = vsel %vm264, %v238, 0
    %v320 = vsel %vm264, %v239, 0
    %v323 = vsel %vm264, %v240, 0
    %v326 = vsel %vm264, %v241, 0
    %v329 = vsel %vm264, %v242, 0
    %v332 = vsel %vm264, %v243, 0
    %v335 = vsel %vm264, %v244, 0
    %v338 = vsel %vm264, %v245, 0
    %v341 = vsel %vm264, %v246, 0
    %v344 = vsel %vm264, %v247, 0
    %v347 = vsel %vm264, %v248, 0
    %v350 = vsel %vm264, %v249, 0
    %v353 = vsel %vm264, %v250, 0
    %v356 = vsel %vm264, %v251, 0
    %v359 = vsel %vm264, %v252, 0
    %vm361 = vcmask 1044480
    %vm362 = vcmask 1045504
    %v363 = vsel %vm361, 4294967295, 65535
    %v364 = vsel %vm362, %v363, 0
    %v366 = vand.u32 %v262, %v364
    %368 = vmatpush.bf16.msra.mxu0 0
    %369 = vmatpush.bf16.msra.mxu0 0
    %370 = vmatpush.bf16.msra.mxu0 0
    %371 = vmatpush.bf16.msra.mxu0 0
    %372 = vmatpush.bf16.msra.mxu0 0
    %373 = vmatpush.bf16.msra.mxu0 0
    %374 = vmatpush.bf16.msra.mxu0 %v366
    %375 = vmatpush.bf16.msra.mxu0 %v261
    %376 = vmatmul.bf16.gmra.mxu0 %v266
    %v377 = vpop.f32.mrf.mxu0
    %v378 = vadd.f32 0.0, %v377
    %v379 = vpop.f32.mrf.mxu0
    %v380 = vadd.f32 0.0, %v379
    %381 = vmatmul.bf16.gmra.mxu0 %v269
    %v382 = vpop.f32.mrf.mxu0
    %v383 = vadd.f32 0.0, %v382
    %v384 = vpop.f32.mrf.mxu0
    %v385 = vadd.f32 0.0, %v384
    %386 = vmatmul.bf16.gmra.mxu0 %v272
    %v387 = vpop.f32.mrf.mxu0
    %v388 = vadd.f32 0.0, %v387
    %v389 = vpop.f32.mrf.mxu0
    %v390 = vadd.f32 0.0, %v389
    %391 = vmatmul.bf16.gmra.mxu0 %v275
    %v392 = vpop.f32.mrf.mxu0
    %v393 = vadd.f32 0.0, %v392
    %v394 = vpop.f32.mrf.mxu0
    %v395 = vadd.f32 0.0, %v394
    %396 = vmatmul.bf16.gmra.mxu0 %v278
    %v397 = vpop.f32.mrf.mxu0
    %v398 = vadd.f32 0.0, %v397
    %v399 = vpop.f32.mrf.mxu0
    %v400 = vadd.f32 0.0, %v399
    %401 = vmatmul.bf16.gmra.mxu0 %v281
    %v402 = vpop.f32.mrf.mxu0
    %v403 = vadd.f32 0.0, %v402
    %v404 = vpop.f32.mrf.mxu0
    %v405 = vadd.f32 0.0, %v404
    %406 = vmatmul.bf16.gmra.mxu0 %v284
    %v407 = vpop.f32.mrf.mxu0
    %v408 = vadd.f32 0.0, %v407
    %v409 = vpop.f32.mrf.mxu0
    %v410 = vadd.f32 0.0, %v409
    %411 = vmatmul.bf16.gmra.mxu0 %v287
    %v412 = vpop.f32.mrf.mxu0
    %v413 = vadd.f32 0.0, %v412
    %v414 = vpop.f32.mrf.mxu0
    %v415 = vadd.f32 0.0, %v414
    %416 = vmatmul.bf16.gmra.mxu0 %v290
    %v417 = vpop.f32.mrf.mxu0
    %v418 = vadd.f32 0.0, %v417
    %v419 = vpop.f32.mrf.mxu0
    %v420 = vadd.f32 0.0, %v419
    %421 = vmatmul.bf16.gmra.mxu0 %v293
    %v422 = vpop.f32.mrf.mxu0
    %v423 = vadd.f32 0.0, %v422
    %v424 = vpop.f32.mrf.mxu0
    %v425 = vadd.f32 0.0, %v424
    %426 = vmatmul.bf16.gmra.mxu0 %v296
    %v427 = vpop.f32.mrf.mxu0
    %v428 = vadd.f32 0.0, %v427
    %v429 = vpop.f32.mrf.mxu0
    %v430 = vadd.f32 0.0, %v429
    %431 = vmatmul.bf16.gmra.mxu0 %v299
    %v432 = vpop.f32.mrf.mxu0
    %v433 = vadd.f32 0.0, %v432
    %v434 = vpop.f32.mrf.mxu0
    %v435 = vadd.f32 0.0, %v434
    %436 = vmatmul.bf16.gmra.mxu0 %v302
    %v437 = vpop.f32.mrf.mxu0
    %v438 = vadd.f32 0.0, %v437
    %v439 = vpop.f32.mrf.mxu0
    %v440 = vadd.f32 0.0, %v439
    %441 = vmatmul.bf16.gmra.mxu0 %v305
    %v442 = vpop.f32.mrf.mxu0
    %v443 = vadd.f32 0.0, %v442
    %v444 = vpop.f32.mrf.mxu0
    %v445 = vadd.f32 0.0, %v444
    %446 = vmatmul.bf16.gmra.mxu0 %v308
    %v447 = vpop.f32.mrf.mxu0
    %v448 = vadd.f32 0.0, %v447
    %v449 = vpop.f32.mrf.mxu0
    %v450 = vadd.f32 0.0, %v449
    %451 = vmatmul.bf16.gmra.mxu0 %v311
    %v452 = vpop.f32.mrf.mxu0
    %v453 = vadd.f32 0.0, %v452
    %v454 = vpop.f32.mrf.mxu0
    %v455 = vadd.f32 0.0, %v454
    %456 = vmatmul.bf16.gmra.mxu0 %v314
    %v457 = vpop.f32.mrf.mxu0
    %v458 = vadd.f32 0.0, %v457
    %v459 = vpop.f32.mrf.mxu0
    %v460 = vadd.f32 0.0, %v459
    %461 = vmatmul.bf16.gmra.mxu0 %v317
    %v462 = vpop.f32.mrf.mxu0
    %v463 = vadd.f32 0.0, %v462
    %v464 = vpop.f32.mrf.mxu0
    %v465 = vadd.f32 0.0, %v464
    %466 = vmatmul.bf16.gmra.mxu0 %v320
    %v467 = vpop.f32.mrf.mxu0
    %v468 = vadd.f32 0.0, %v467
    %v469 = vpop.f32.mrf.mxu0
    %v470 = vadd.f32 0.0, %v469
    %471 = vmatmul.bf16.gmra.mxu0 %v323
    %v472 = vpop.f32.mrf.mxu0
    %v473 = vadd.f32 0.0, %v472
    %v474 = vpop.f32.mrf.mxu0
    %v475 = vadd.f32 0.0, %v474
    %476 = vmatmul.bf16.gmra.mxu0 %v326
    %v477 = vpop.f32.mrf.mxu0
    %v478 = vadd.f32 0.0, %v477
    %v479 = vpop.f32.mrf.mxu0
    %v480 = vadd.f32 0.0, %v479
    %481 = vmatmul.bf16.gmra.mxu0 %v329
    %v482 = vpop.f32.mrf.mxu0
    %v483 = vadd.f32 0.0, %v482
    %v484 = vpop.f32.mrf.mxu0
    %v485 = vadd.f32 0.0, %v484
    %486 = vmatmul.bf16.gmra.mxu0 %v332
    %v487 = vpop.f32.mrf.mxu0
    %v488 = vadd.f32 0.0, %v487
    %v489 = vpop.f32.mrf.mxu0
    %v490 = vadd.f32 0.0, %v489
    %491 = vmatmul.bf16.gmra.mxu0 %v335
    %v492 = vpop.f32.mrf.mxu0
    %v493 = vadd.f32 0.0, %v492
    %v494 = vpop.f32.mrf.mxu0
    %v495 = vadd.f32 0.0, %v494
    %496 = vmatmul.bf16.gmra.mxu0 %v338
    %v497 = vpop.f32.mrf.mxu0
    %v498 = vadd.f32 0.0, %v497
    %v499 = vpop.f32.mrf.mxu0
    %v500 = vadd.f32 0.0, %v499
    %501 = vmatmul.bf16.gmra.mxu0 %v341
    %v502 = vpop.f32.mrf.mxu0
    %v503 = vadd.f32 0.0, %v502
    %v504 = vpop.f32.mrf.mxu0
    %v505 = vadd.f32 0.0, %v504
    %506 = vmatmul.bf16.gmra.mxu0 %v344
    %v507 = vpop.f32.mrf.mxu0
    %v508 = vadd.f32 0.0, %v507
    %v509 = vpop.f32.mrf.mxu0
    %v510 = vadd.f32 0.0, %v509
    %511 = vmatmul.bf16.gmra.mxu0 %v347
    %v512 = vpop.f32.mrf.mxu0
    %v513 = vadd.f32 0.0, %v512
    %v514 = vpop.f32.mrf.mxu0
    %v515 = vadd.f32 0.0, %v514
    %516 = vmatmul.bf16.gmra.mxu0 %v350
    %v517 = vpop.f32.mrf.mxu0
    %v518 = vadd.f32 0.0, %v517
    %v519 = vpop.f32.mrf.mxu0
    %v520 = vadd.f32 0.0, %v519
    %521 = vmatmul.bf16.gmra.mxu0 %v353
    %v522 = vpop.f32.mrf.mxu0
    %v523 = vadd.f32 0.0, %v522
    %v524 = vpop.f32.mrf.mxu0
    %v525 = vadd.f32 0.0, %v524
    %526 = vmatmul.bf16.gmra.mxu0 %v356
    %v527 = vpop.f32.mrf.mxu0
    %v528 = vadd.f32 0.0, %v527
    %v529 = vpop.f32.mrf.mxu0
    %v530 = vadd.f32 0.0, %v529
    %531 = vmatmul.bf16.gmra.mxu0 %v359
    %v532 = vpop.f32.mrf.mxu0
    %v533 = vadd.f32 0.0, %v532
    %v534 = vpop.f32.mrf.mxu0
    %v535 = vadd.f32 0.0, %v534
    %536 = vdwg.mxu0
    %v537 = vmax.f32 %v378, 0.0
    %v538 = vmax.f32 %v380, 0.0
    %v539 = vmax.f32 %v383, 0.0
    %v540 = vmax.f32 %v385, 0.0
    %v541 = vmax.f32 %v388, 0.0
    %v542 = vmax.f32 %v390, 0.0
    %v543 = vmax.f32 %v393, 0.0
    %v544 = vmax.f32 %v395, 0.0
    %v545 = vmax.f32 %v398, 0.0
    %v546 = vmax.f32 %v400, 0.0
    %v547 = vmax.f32 %v403, 0.0
    %v548 = vmax.f32 %v405, 0.0
    %v549 = vmax.f32 %v408, 0.0
    %v550 = vmax.f32 %v410, 0.0
    %v551 = vmax.f32 %v413, 0.0
    %v552 = vmax.f32 %v415, 0.0
    %v553 = vmax.f32 %v418, 0.0
    %v554 = vmax.f32 %v420, 0.0
    %v555 = vmax.f32 %v423, 0.0
    %v556 = vmax.f32 %v425, 0.0
    %v557 = vmax.f32 %v428, 0.0
    %v558 = vmax.f32 %v430, 0.0
    %v559 = vmax.f32 %v433, 0.0
    %v560 = vmax.f32 %v435, 0.0
    %v561 = vmax.f32 %v438, 0.0
    %v562 = vmax.f32 %v440, 0.0
    %v563 = vmax.f32 %v443, 0.0
    %v564 = vmax.f32 %v445, 0.0
    %v565 = vmax.f32 %v448, 0.0
    %v566 = vmax.f32 %v450, 0.0
    %v567 = vmax.f32 %v453, 0.0
    %v568 = vmax.f32 %v455, 0.0
    %v569 = vmax.f32 %v458, 0.0
    %v570 = vmax.f32 %v460, 0.0
    %v571 = vmax.f32 %v463, 0.0
    %v572 = vmax.f32 %v465, 0.0
    %v573 = vmax.f32 %v468, 0.0
    %v574 = vmax.f32 %v470, 0.0
    %v575 = vmax.f32 %v473, 0.0
    %v576 = vmax.f32 %v475, 0.0
    %v577 = vmax.f32 %v478, 0.0
    %v578 = vmax.f32 %v480, 0.0
    %v579 = vmax.f32 %v483, 0.0
    %v580 = vmax.f32 %v485, 0.0
    %v581 = vmax.f32 %v488, 0.0
    %v582 = vmax.f32 %v490, 0.0
    %v583 = vmax.f32 %v493, 0.0
    %v584 = vmax.f32 %v495, 0.0
    %v585 = vmax.f32 %v498, 0.0
    %v586 = vmax.f32 %v500, 0.0
    %v587 = vmax.f32 %v503, 0.0
    %v588 = vmax.f32 %v505, 0.0
    %v589 = vmax.f32 %v508, 0.0
    %v590 = vmax.f32 %v510, 0.0
    %v591 = vmax.f32 %v513, 0.0
    %v592 = vmax.f32 %v515, 0.0
    %v593 = vmax.f32 %v518, 0.0
    %v594 = vmax.f32 %v520, 0.0
    %v595 = vmax.f32 %v523, 0.0
    %v596 = vmax.f32 %v525, 0.0
    %v597 = vmax.f32 %v528, 0.0
    %v598 = vmax.f32 %v530, 0.0
    %v599 = vmax.f32 %v533, 0.0
    %v600 = vmax.f32 %v535, 0.0
    %vm601 = vcmask 523264
    %v602 = vsel %vm601, %v537, 0.0
    %v603 = vsel %vm601, %v538, 0.0
    %v604 = vadd.f32 %v602, %v603
    %v605 = vsel %vm601, %v539, 0.0
    %v606 = vadd.f32 %v604, %v605
    %v607 = vsel %vm601, %v540, 0.0
    %v608 = vadd.f32 %v606, %v607
    %v609 = vsel %vm601, %v541, 0.0
    %v610 = vadd.f32 %v608, %v609
    %v611 = vsel %vm601, %v542, 0.0
    %v612 = vadd.f32 %v610, %v611
    %v613 = vsel %vm601, %v543, 0.0
    %v614 = vadd.f32 %v612, %v613
    %v615 = vsel %vm601, %v544, 0.0
    %v616 = vadd.f32 %v614, %v615
    %v617 = vsel %vm601, %v545, 0.0
    %v618 = vadd.f32 %v616, %v617
    %v619 = vsel %vm601, %v546, 0.0
    %v620 = vadd.f32 %v618, %v619
    %v621 = vsel %vm601, %v547, 0.0
    %v622 = vadd.f32 %v620, %v621
    %v623 = vsel %vm601, %v548, 0.0
    %v624 = vadd.f32 %v622, %v623
    %v625 = vsel %vm601, %v549, 0.0
    %v626 = vadd.f32 %v624, %v625
    %v627 = vsel %vm601, %v550, 0.0
    %v628 = vadd.f32 %v626, %v627
    %v629 = vsel %vm601, %v551, 0.0
    %v630 = vadd.f32 %v628, %v629
    %v631 = vsel %vm601, %v552, 0.0
    %v632 = vadd.f32 %v630, %v631
    %v633 = vsel %vm601, %v553, 0.0
    %v634 = vadd.f32 %v632, %v633
    %v635 = vsel %vm601, %v554, 0.0
    %v636 = vadd.f32 %v634, %v635
    %v637 = vsel %vm601, %v555, 0.0
    %v638 = vadd.f32 %v636, %v637
    %v639 = vsel %vm601, %v556, 0.0
    %v640 = vadd.f32 %v638, %v639
    %v641 = vsel %vm601, %v557, 0.0
    %v642 = vadd.f32 %v640, %v641
    %v643 = vsel %vm601, %v558, 0.0
    %v644 = vadd.f32 %v642, %v643
    %v645 = vsel %vm601, %v559, 0.0
    %v646 = vadd.f32 %v644, %v645
    %v647 = vsel %vm601, %v560, 0.0
    %v648 = vadd.f32 %v646, %v647
    %v649 = vsel %vm601, %v561, 0.0
    %v650 = vadd.f32 %v648, %v649
    %v651 = vsel %vm601, %v562, 0.0
    %v652 = vadd.f32 %v650, %v651
    %v653 = vsel %vm601, %v563, 0.0
    %v654 = vadd.f32 %v652, %v653
    %v655 = vsel %vm601, %v564, 0.0
    %v656 = vadd.f32 %v654, %v655
    %v657 = vsel %vm601, %v565, 0.0
    %v658 = vadd.f32 %v656, %v657
    %v659 = vsel %vm601, %v566, 0.0
    %v660 = vadd.f32 %v658, %v659
    %v661 = vsel %vm601, %v567, 0.0
    %v662 = vadd.f32 %v660, %v661
    %v663 = vsel %vm601, %v568, 0.0
    %v664 = vadd.f32 %v662, %v663
    %v665 = vrot.slane %v664, 4
    %v666 = vadd.f32 %v664, %v665
    %v667 = vrot.slane %v666, 2
    %v668 = vadd.f32 %v666, %v667
    %v669 = vrot.slane %v668, 1
    %v670 = vadd.f32 %v668, %v669
    %v671 = vsel %vm601, %v569, 0.0
    %v672 = vsel %vm601, %v570, 0.0
    %v673 = vadd.f32 %v671, %v672
    %v674 = vsel %vm601, %v571, 0.0
    %v675 = vadd.f32 %v673, %v674
    %v676 = vsel %vm601, %v572, 0.0
    %v677 = vadd.f32 %v675, %v676
    %v678 = vsel %vm601, %v573, 0.0
    %v679 = vadd.f32 %v677, %v678
    %v680 = vsel %vm601, %v574, 0.0
    %v681 = vadd.f32 %v679, %v680
    %v682 = vsel %vm601, %v575, 0.0
    %v683 = vadd.f32 %v681, %v682
    %v684 = vsel %vm601, %v576, 0.0
    %v685 = vadd.f32 %v683, %v684
    %v686 = vsel %vm601, %v577, 0.0
    %v687 = vadd.f32 %v685, %v686
    %v688 = vsel %vm601, %v578, 0.0
    %v689 = vadd.f32 %v687, %v688
    %v690 = vsel %vm601, %v579, 0.0
    %v691 = vadd.f32 %v689, %v690
    %v692 = vsel %vm601, %v580, 0.0
    %v693 = vadd.f32 %v691, %v692
    %v694 = vsel %vm601, %v581, 0.0
    %v695 = vadd.f32 %v693, %v694
    %v696 = vsel %vm601, %v582, 0.0
    %v697 = vadd.f32 %v695, %v696
    %v698 = vsel %vm601, %v583, 0.0
    %v699 = vadd.f32 %v697, %v698
    %v700 = vsel %vm601, %v584, 0.0
    %v701 = vadd.f32 %v699, %v700
    %v702 = vsel %vm601, %v585, 0.0
    %v703 = vadd.f32 %v701, %v702
    %v704 = vsel %vm601, %v586, 0.0
    %v705 = vadd.f32 %v703, %v704
    %v706 = vsel %vm601, %v587, 0.0
    %v707 = vadd.f32 %v705, %v706
    %v708 = vsel %vm601, %v588, 0.0
    %v709 = vadd.f32 %v707, %v708
    %v710 = vsel %vm601, %v589, 0.0
    %v711 = vadd.f32 %v709, %v710
    %v712 = vsel %vm601, %v590, 0.0
    %v713 = vadd.f32 %v711, %v712
    %v714 = vsel %vm601, %v591, 0.0
    %v715 = vadd.f32 %v713, %v714
    %v716 = vsel %vm601, %v592, 0.0
    %v717 = vadd.f32 %v715, %v716
    %v718 = vsel %vm601, %v593, 0.0
    %v719 = vadd.f32 %v717, %v718
    %v720 = vsel %vm601, %v594, 0.0
    %v721 = vadd.f32 %v719, %v720
    %v722 = vsel %vm601, %v595, 0.0
    %v723 = vadd.f32 %v721, %v722
    %v724 = vsel %vm601, %v596, 0.0
    %v725 = vadd.f32 %v723, %v724
    %v726 = vsel %vm601, %v597, 0.0
    %v727 = vadd.f32 %v725, %v726
    %v728 = vsel %vm601, %v598, 0.0
    %v729 = vadd.f32 %v727, %v728
    %v730 = vsel %vm601, %v599, 0.0
    %v731 = vadd.f32 %v729, %v730
    %v732 = vsel %vm601, %v600, 0.0
    %v733 = vadd.f32 %v731, %v732
    %v734 = vrot.slane %v733, 4
    %v735 = vadd.f32 %v733, %v734
    %v736 = vrot.slane %v735, 2
    %v737 = vadd.f32 %v735, %v736
    %v738 = vrot.slane %v737, 1
    %v739 = vadd.f32 %v737, %v738
    %v740 = vrcp.pop 256.0
    %v741 = vmul.f32 256.0, %v740
    %v742 = vsub.f32 1.0, %v741
    %v743 = vmul.f32 %v740, %v742
    %v744 = vadd.f32 %v740, %v743
    %vm745 = vweird.f32 %v740
    %v746 = vsel %vm745, %v740, %v744
    %v747 = vmul.f32 %v670, %v746
    %v748 = vmul.f32 %v739, %v746
    %v749 = vpack.c.bf16 %v747, %v747
    %v750 = vpack.c.bf16 %v748, %v748
    %v751 = vld [vmem:[%s2] sm:$0xf]
    %v752 = vld [vmem:[%s2 + $0x4] sm:$0xf]
    %v753 = vld [vmem:[%s2 + $0x8] sm:$0xf]
    %v754 = vld [vmem:[%s2 + $0xc] sm:$0xf]
    %v755 = vld [vmem:[%s2 + $0x10] sm:$0xf]
    %v756 = vld [vmem:[%s2 + $0x14] sm:$0xf]
    %v757 = vld [vmem:[%s2 + $0x18] sm:$0xf]
    %v758 = vld [vmem:[%s2 + $0x1c] sm:$0xf]
    %v761 = vunpack.c.l.b16 %v749
    %v762 = vunpack.c.l.b16 %v750
    %vm763 = vcmask 1041409
    %v764 = vsel %vm763, %v762, %v761
    %v765 = vpack.c.b16 %v764, %v764
    %v774 = vunpack.c.l.b16 %v751
    %v775 = vunpack.c.l.b16 %v752
    %v776 = vunpack.c.l.b16 %v753
    %v777 = vunpack.c.l.b16 %v754
    %v778 = vunpack.c.l.b16 %v755
    %v779 = vunpack.c.l.b16 %v756
    %v780 = vunpack.c.l.b16 %v757
    %v781 = vunpack.c.l.b16 %v758
    %v782 = vpack.c.b16 %v775, %v774
    %v783 = vpack.c.b16 %v777, %v776
    %v784 = vpack.c.b16 %v779, %v778
    %v785 = vpack.c.b16 %v781, %v780
    %v791 = vsel %vm601, %v765, 0
    %793 = vmatpush.bf16.msra.mxu0 0
    %794 = vmatpush.bf16.msra.mxu0 0
    %795 = vmatpush.bf16.msra.mxu0 0
    %796 = vmatpush.bf16.msra.mxu0 0
    %797 = vmatpush.bf16.msra.mxu0 %v785
    %798 = vmatpush.bf16.msra.mxu0 %v784
    %799 = vmatpush.bf16.msra.mxu0 %v783
    %800 = vmatpush.bf16.msra.mxu0 %v782
    %801 = vmatmul.bf16.gmra.mxu0 %v791
    %v802 = vpop.f32.mrf.mxu0
    %v803 = vadd.f32 0.0, %v802
    %v804 = vpop.f32.mrf.mxu0
    %805 = vdwg.mxu0
    %v806 = vmax.f32 %v803, 0.0
    %v807 = vpack.c.bf16 %v806, %v806
    %v808 = vld [vmem:[%s3] sm:$0xf]
    %v809 = vld [vmem:[%s3 + $0x4] sm:$0xf]
    %v812 = vunpack.c.l.b16 %v808
    %v813 = vunpack.c.l.b16 %v809
    %v814 = vpack.c.b16 %v813, %v812
    %vm816 = vcmask 130048
    %v818 = vsel %vm816, %v807, 0
    %820 = vmatpush.bf16.msra.mxu0 0
    %821 = vmatpush.bf16.msra.mxu0 0
    %822 = vmatpush.bf16.msra.mxu0 0
    %823 = vmatpush.bf16.msra.mxu0 0
    %824 = vmatpush.bf16.msra.mxu0 0
    %825 = vmatpush.bf16.msra.mxu0 0
    %826 = vmatpush.bf16.msra.mxu0 0
    %827 = vmatpush.bf16.msra.mxu0 %v814
    %828 = vmatmul.bf16.gmra.mxu0 %v818
    %v829 = vpop.f32.mrf.mxu0
    %v830 = vadd.f32 0.0, %v829
    %v831 = vpop.f32.mrf.mxu0
    %832 = vdwg.mxu0
    %v833 = vxor.u32 %v830, 2147483648
    %v834 = vmul.f32 %v833, 1.442695
    %v835 = vpow.pop %v834
    %v836 = vadd.f32 %v835, 1.0
    %v837 = vrcp.pop %v836
    %v838 = vmul.f32 %v836, %v837
    %v839 = vsub.f32 1.0, %v838
    %v840 = vmul.f32 %v837, %v839
    %v841 = vadd.f32 %v837, %v840
    %vm842 = vweird.f32 %v836
    %vm843 = vweird.f32 %v837
    %vm844 = vmor %vm842, %vm843
    %v845 = vsel %vm844, %v837, %v841
    %v846 = vand.u32 2147483647, %v836
    %vm847 = vcmp.eq.f32.partialorder %v846, 8.507059e+37
    %v848 = vand.u32 %v836, 2147483648
    %v849 = vor.u32 1.1754944e-38, %v848
    %v850 = vsel %vm847, %v849, %v845
    %v851 = vmul.f32 1.0, %v850
    %v853 = vrot.slane %v851, 1
    %v856 = vmul.f32 %v747, %v851
    %v857 = vmul.f32 %v748, %v853
    %v858 = vpack.c.bf16 %v856, %v856
    %v859 = vpack.c.bf16 %v857, %v857
    %v860 = vld [vmem:[%s4] sm:$0xf]
    %v861 = vld [vmem:[%s4 + $0x4] sm:$0xf]
    %v862 = vld [vmem:[%s4 + $0x8] sm:$0xf]
    %v863 = vld [vmem:[%s4 + $0xc] sm:$0xf]
    %v864 = vld [vmem:[%s4 + $0x10] sm:$0xf]
    %v865 = vld [vmem:[%s4 + $0x14] sm:$0xf]
    %v866 = vld [vmem:[%s4 + $0x18] sm:$0xf]
    %v867 = vld [vmem:[%s4 + $0x1c] sm:$0xf]
    %v870 = vunpack.c.l.b16 %v858
    %v871 = vunpack.c.l.b16 %v859
    %v872 = vrot.slane %v871, 7
    %v873 = vsel %vm763, %v872, %v870
    %v874 = vpack.c.b16 %v873, %v873
    %v883 = vunpack.c.l.b16 %v860
    %v884 = vunpack.c.l.b16 %v861
    %v885 = vunpack.c.l.b16 %v862
    %v886 = vunpack.c.l.b16 %v863
    %v887 = vunpack.c.l.b16 %v864
    %v888 = vunpack.c.l.b16 %v865
    %v889 = vunpack.c.l.b16 %v866
    %v890 = vunpack.c.l.b16 %v867
    %v891 = vpack.c.b16 %v884, %v883
    %v892 = vpack.c.b16 %v886, %v885
    %v893 = vpack.c.b16 %v888, %v887
    %v894 = vpack.c.b16 %v890, %v889
    %v900 = vsel %vm601, %v874, 0
    %902 = vmatpush.bf16.msra.mxu0 0
    %903 = vmatpush.bf16.msra.mxu0 0
    %904 = vmatpush.bf16.msra.mxu0 0
    %905 = vmatpush.bf16.msra.mxu0 0
    %906 = vmatpush.bf16.msra.mxu0 %v894
    %907 = vmatpush.bf16.msra.mxu0 %v893
    %908 = vmatpush.bf16.msra.mxu0 %v892
    %909 = vmatpush.bf16.msra.mxu0 %v891
    %910 = vmatmul.bf16.gmra.mxu0 %v900
    %v911 = vpop.f32.mrf.mxu0
    %v912 = vadd.f32 0.0, %v911
    %v913 = vpop.f32.mrf.mxu0
    %914 = vdwg.mxu0
    %v917 = vrot.slane %v857, 7
    %v918 = vsel %vm763, %v917, %v856
    %vm920 = vcmask 517120
    %v921 = vsel %vm920, %v918, 0.0
    %v922 = vrot.slane %v921, 4
    %v923 = vadd.f32 %v921, %v922
    %v924 = vrot.slane %v923, 2
    %v925 = vadd.f32 %v923, %v924
    %v926 = vrot.slane %v925, 1
    %v927 = vadd.f32 %v925, %v926
    %v928 = vrcp.pop 2.0
    %v929 = vmul.f32 2.0, %v928
    %v930 = vsub.f32 1.0, %v929
    %v931 = vmul.f32 %v928, %v930
    %v932 = vadd.f32 %v928, %v931
    %vm933 = vweird.f32 %v928
    %v934 = vsel %vm933, %v928, %v932
    %v935 = vmul.f32 %v927, %v934
    %v936 = vperm.slane %v935, 0
    %v937 = vsub.f32 %v856, %v936
    %v938 = vsub.f32 %v857, %v936
    %v939 = vmul.f32 %v937, %v937
    %v940 = vmul.f32 %v938, %v938
    %v943 = vrot.slane %v940, 7
    %v944 = vsel %vm763, %v943, %v939
    %v946 = vsel %vm920, %v944, 0.0
    %v947 = vrot.slane %v946, 4
    %v948 = vadd.f32 %v946, %v947
    %v949 = vrot.slane %v948, 2
    %v950 = vadd.f32 %v948, %v949
    %v951 = vrot.slane %v950, 1
    %v952 = vadd.f32 %v950, %v951
    %v953 = vadd.f32 %v952, 1e-08
    %v954 = vlog2.pop %v953
    %v955 = vmul.f32 %v954, 0.6931472
    %957 = vrot.lane.b32.xlu0 %v955, 96
    %v958 = vpop.permute.xlu0 %957
    %vm960 = vcmask 253952
    %v961 = vsel %vm960, %v958, 0.0
    %962 = vadd.xlane.f32.xlu0 %v961
    %v963 = vpop.xlane.xlu0 %962
    %v964 = vsel %vm960, %v955, 0.0
    %965 = vadd.xlane.f32.xlu0 %v964
    %v966 = vpop.xlane.xlu0 %965
    %v967 = vsub.f32 %v963, %v966
    %vm968 = vcmask 0
    %969 = vst.msk [vmem:[#allocation4] sm:$0x1] %vm968, %v967
    %v972 = vsel %vm763, %v748, %v747
    %974 = vrot.lane.b32.xlu0 %v918, 64
    %v975 = vpop.permute.xlu0 %974
    %v977 = vsel %vm601, %v972, %v975
    %v980 = vrot.slane %v912, 6
    %vm981 = vcmask 1041408
    %v982 = vsel %vm981, %v977, %v980
    %984 = vst [vmem:[#allocation2] sm:$0xf] %v982
    // Predicated region
    $region22: #{tpu_custom_call.1} parent=1 // pred_check
      _
    $region23: #{tpu_custom_call.1} parent=1 // pred_check_branch
      %986 = sbr.rel (0) target = $region25
    $region24: #{tpu_custom_call.1} parent=1 // pred_region
      %988 = vsyncadd [#allocation3], 0
      %s990 = sshll.u32 [#allocation2], 4
      %s991 = int_to_ptr.vmem [resolvable:$true] %s990
      %s992 = sshll.u32 %s5, 4
      %s993 = int_to_ptr.hbm [resolvable:$true] %s992
      %995 = dma.vmem_to_hbm [thread:$0]  %s991, 64, %s993, [#allocation3]
    $region25: #{tpu_custom_call.1} parent=1 // pred_fallthru
      _
    // Predicated region
    $region26: #{tpu_custom_call.1} parent=1 // pred_check
      _
    $region27: #{tpu_custom_call.1} parent=1 // pred_check_branch
      %997 = sbr.rel (0) target = $region29
    $region28: #{tpu_custom_call.1} parent=1 // pred_region
      %999 = vsyncadd [#allocation5], 0
      %s1001 = sshll.u32 [#allocation4], 4
      %s1002 = int_to_ptr.vmem [resolvable:$true] %s1001
      %s1003 = sshll.u32 %s6, 4
      %s1004 = int_to_ptr.hbm [resolvable:$true] %s1003
      %1006 = dma.vmem_to_hbm [thread:$0]  %s1002, 16, %s1004, [#allocation5]
    $region29: #{tpu_custom_call.1} parent=1 // pred_fallthru
      _
    // Predicated region
    $region30: #{tpu_custom_call.1} parent=1 // pred_check
      _
    $region31: #{tpu_custom_call.1} parent=1 // pred_check_branch
      %1008 = sbr.rel (0) target = $region33
    $region32: #{tpu_custom_call.1} parent=1 // pred_region
      %1010 = dma.done [#allocation3], 64
    $region33: #{tpu_custom_call.1} parent=1 // pred_fallthru
      _
    // Predicated region
    $region34: #{tpu_custom_call.1} parent=1 // pred_check
      _
    $region35: #{tpu_custom_call.1} parent=1 // pred_check_branch
      %1012 = sbr.rel (0) target = $region37
    $region36: #{tpu_custom_call.1} parent=1 // pred_region
      %1014 = dma.done [#allocation5], 16
    $region37: #{tpu_custom_call.1} parent=1 // pred_fallthru
      _
    %1015 = vsyncpa [#allocation3], 1
    %1016 = vsyncpa [#allocation5], 1

</llo_original>
